<compile_context>
chip_gen: v5e
topology: v5e:2x2
jax: 0.10.0
libtpu: 0.0.40
codegen_flags: <defaults>
</compile_context>

<pallas_src>
import functools

import jax
import jax.numpy as jnp
from jax import lax
from jax.experimental import pallas as pl
from jax.experimental.pallas import tpu as pltpu


_SENTINEL = 1.0e6   # coordinate value given to dummy/padded points
_CM = 8             # points per in-kernel sub-chunk (one sublane group)


def _round_up(x: int, m: int) -> int:
    return ((x + m - 1) // m) * m


# ---------------------------------------------------------------------------
# Kernel
# ---------------------------------------------------------------------------
def _fused_rational_hat_kernel(pts_ref, c_ref, r_ref, o_ref):
    """One (TB, TM) point tile of one diagram slab vs. all Kp structure elems.

    pts_ref: (TB, TM, 2)  padded points; dummy points carry SENTINEL coords
    c_ref  : (2, Kp)      centers, transposed so K is lane-dense
    r_ref  : (1, Kp)      radii
    o_ref  : (TB, Kp)     output, resident accumulator across the M grid axis
    """
    @pl.when(pl.program_id(2) == 0)
    def _init():
        o_ref[...] = jnp.zeros_like(o_ref)

    c0 = c_ref[0:1, :]                       # (1, Kp)
    c1 = c_ref[1:2, :]                       # (1, Kp)
    rad = jnp.abs(r_ref[...])                # (1, Kp)

    tb, tm, _ = pts_ref.shape
    kp = o_ref.shape[-1]
    n_chunks = tm // _CM

    def _recip(x):
        # EUP approx reciprocal + one Newton step (~f32 accurate, VALU-cheap).
        y = pl.reciprocal(x, approx=True)
        return y * (2.0 - x * y)

    # Static loop over 8-row batch slabs keeps per-iteration live tiles at
    # ~8 vregs each regardless of TB (no spills); each slab ends with a VMEM
    # store so values die at the slab boundary.
    for bi in range(tb // 8):
        rows = slice(bi * 8, (bi + 1) * 8)

        def chunk(ci, acc):
            off = pl.multiple_of(ci * _CM, _CM)
            p = pts_ref[rows, pl.ds(off, _CM), :]                  # (8, CM, 2)
            dist = (jnp.abs(p[:, :, 0:1] - c0) +
                    jnp.abs(p[:, :, 1:2] - c1))                    # (8, CM, Kp)
            pos = _recip(1.0 + dist)
            neg = _recip(1.0 + jnp.abs(rad - dist))
            return acc + jnp.sum(pos - neg, axis=1)                # (8, Kp)

        acc = lax.fori_loop(0, n_chunks, chunk,
                            jnp.zeros((8, kp), jnp.float32), unroll=True)
        o_ref[rows, :] = o_ref[rows, :] + acc


# ---------------------------------------------------------------------------
# Host-side wrappers
# ---------------------------------------------------------------------------
def prepare_readout_params(params):
    """Pad / transpose / stack the three SLayer parameter sets ONCE.

    Do this at parameter-init time, not per forward.  Returns centers as
    (3, 2, Kp) and radii as (3, 1, Kp) with K padded to a lane-dense multiple
    of 128 (padded columns contribute exactly zero and are sliced away).
    """
    names = ("ldgm_0", "ldgm_0_ess", "ldgm_1_ess")
    K = params[names[0]]["centers"].shape[0]
    for n in names:
        assert params[n]["centers"].shape[0] == K
    Kp = _round_up(K, 128)

    c = jnp.zeros((3, 2, Kp), jnp.float32)
    r = jnp.zeros((3, 1, Kp), jnp.float32)
    for g, name in enumerate(names):
        cg = params[name]["centers"].astype(jnp.float32)     # (K, d), d in {1,2}
        d = cg.shape[1]
        c = c.at[g, :d, :K].set(cg.T)
        r = r.at[g, 0, :K].set(params[name]["radius"].astype(jnp.float32))
    return {"centers_t": c, "radius": r, "K": K}


def standard_pershom_readout(h_0, h_0_ess, h_1_ess, prepared):
    """JAX/Pallas equivalent of StandardPershomReadout.forward.

    h_0      = (points (B, M0, 2), mask (B, M0))   0-dim (birth, death) pairs
    h_0_ess  = (points (B, M1, 1), mask (B, M1))   0-dim essential births
    h_1_ess  = (points (B, M2, 1), mask (B, M2))   1-dim essential births
    prepared = output of prepare_readout_params(params)
    returns (B, 3 * num_struct_elements) float32
    """
    # TODO(synk): prepare_batch_if_necessary (ragged list-of-diagrams ->
    # padded batch + not-dummy mask) is host-side preprocessing, not in-kernel.
    diagrams = (h_0, h_0_ess, h_1_ess)
    B = diagrams[0][0].shape[0]
    K = prepared["K"]
    Kp = prepared["centers_t"].shape[-1]

    M_max = max(d[0].shape[1] for d in diagrams)
    TB = min(_round_up(B, 8), 32)
    Bp = _round_up(B, TB)
    TM = min(_round_up(M_max, 8), 128)
    Mp = _round_up(M_max, TM)

    # One fused point slab (3, Bp, Mp, 2); dummy/padded points -> SENTINEL so
    # no mask array (and no mask multiply) is needed in the kernel.
    pts = jnp.full((3, Bp, Mp, 2), _SENTINEL, jnp.float32)
    for g, (p, m) in enumerate(diagrams):
        Bg, Mg, dg = p.shape
        p32 = p.astype(jnp.float32)
        if dg == 1:
            # Second coordinate 0, matched by a zero center coordinate.
            p32 = jnp.concatenate([p32, jnp.zeros_like(p32)], axis=-1)
        p32 = jnp.where(m.astype(jnp.float32)[..., None] > 0, p32, _SENTINEL)
        pts = pts.at[g, :Bg, :Mg, :].set(p32)

    grid = (3, Bp // TB, Mp // TM)
    bytes_accessed = (3 * Bp * Mp * 2 + 3 * 2 * Kp + 3 * Kp + 3 * Bp * Kp) * 4

    out = pl.pallas_call(
        _fused_rational_hat_kernel,
        out_shape=jax.ShapeDtypeStruct((3, Bp, Kp), jnp.float32),
        grid=grid,
        in_specs=[
            pl.BlockSpec((None, TB, TM, 2), lambda g, b, m: (g, b, m, 0)),
            pl.BlockSpec((None, 2, Kp), lambda g, b, m: (g, 0, 0)),
            pl.BlockSpec((None, 1, Kp), lambda g, b, m: (g, 0, 0)),
        ],
        out_specs=pl.BlockSpec((None, TB, Kp), lambda g, b, m: (g, b, 0)),
        compiler_params=pltpu.CompilerParams(
            dimension_semantics=("parallel", "parallel", "arbitrary")),
        cost_estimate=pl.CostEstimate(
            flops=18 * 3 * Bp * Mp * Kp,
            transcendentals=2 * 3 * Bp * Mp * Kp,
            bytes_accessed=bytes_accessed),
    )(pts, prepared["centers_t"], prepared["radius"])

    # (3, Bp, Kp) -> (B, 3, K) -> (B, 3K), matching torch.cat([...], dim=1).
    out = out[:, :B, :K]
    return jnp.transpose(out, (1, 0, 2)).reshape(B, 3 * K)

    # Note: cls_head (Linear/LeakyReLU/Dropout/Linear) is constructed in
    # __init__ but never called in forward(), so it is intentionally omitted.


# ---------------------------------------------------------------------------
# Demo / correctness check
# ---------------------------------------------------------------------------
if __name__ == "__main__":
    key = jax.random.PRNGKey(0)
    k1, k2, k3, k4, k5, k6 = jax.random.split(key, 6)

    B = 2            # batch of persistence-diagram sets
    K = 32           # num_struct_elements
    M0, M0e, M1e = 16, 8, 8

    # SLayerRationalHat init: centers ~ U[0,1), radius = radius_init = 0.1.
    params = {
        "ldgm_0": {"centers": jax.random.uniform(k1, (K, 2), jnp.float32),
                   "radius": 0.1 * jnp.ones((K,), jnp.float32)},
        "ldgm_0_ess": {"centers": jax.random.uniform(k2, (K, 1), jnp.float32),
                       "radius": 0.1 * jnp.ones((K,), jnp.float32)},
        "ldgm_1_ess": {"centers": jax.random.uniform(k3, (K, 1), jnp.float32),
                       "radius": 0.1 * jnp.ones((K,), jnp.float32)},
    }
    prepared = prepare_readout_params(params)   # once, at init time

    # Padded diagrams + not-dummy masks (variable number of points per graph).
    pts_0 = jax.random.uniform(k4, (B, M0, 2), jnp.float32)
    pts_0e = jax.random.uniform(k5, (B, M0e, 1), jnp.float32)
    pts_1e = jax.random.uniform(k6, (B, M1e, 1), jnp.float32)

    def make_mask(M, lens):
        return (jnp.arange(M)[None, :] < lens[:, None]).astype(jnp.float32)

    mask_0 = make_mask(M0, jnp.array([M0, 10], jnp.int32))
    mask_0e = make_mask(M0e, jnp.array([M0e, 5], jnp.int32))
    mask_1e = make_mask(M1e, jnp.array([6, M1e], jnp.int32))

    out = standard_pershom_readout((pts_0, mask_0), (pts_0e, mask_0e),
                                   (pts_1e, mask_1e), prepared)
    out = jax.block_until_ready(out)

    # Pure-JAX reference (exact divides, explicit mask).
    def ref_slayer(points, mask, centers, radius):
        dist = jnp.sum(jnp.abs(points[:, :, None, :] - centers[None, None, :, :]),
                       axis=-1)
        pos = 1.0 / (1.0 + dist)
        neg = 1.0 / (1.0 + jnp.abs(jnp.abs(radius)[None, None, :] - dist))
        return jnp.sum((pos - neg) * mask[:, :, None], axis=1)

    ref = jnp.concatenate([
        ref_slayer(pts_0, mask_0, params["ldgm_0"]["centers"],
                   params["ldgm_0"]["radius"]),
        ref_slayer(pts_0e, mask_0e, params["ldgm_0_ess"]["centers"],
                   params["ldgm_0_ess"]["radius"]),
        ref_slayer(pts_1e, mask_1e, params["ldgm_1_ess"]["centers"],
                   params["ldgm_1_ess"]["radius"]),
    ], axis=1)

    assert out.shape == (B, 3 * K), out.shape
    assert out.dtype == jnp.float32, out.dtype
    max_err = float(jnp.max(jnp.abs(out - ref)))
    assert bool(jnp.allclose(out, ref, atol=1e-4, rtol=1e-4)), max_err

    print("KERNEL_OK")
</pallas_src>

<mosaic_0001>
module attributes {stable_mosaic.version = 11 : i64} {
  func.func @_fused_rational_hat_kernel(%arg0: i32, %arg1: i32, %arg2: i32, %arg3: memref<1x8x16x2xf32, #tpu.memory_space<vmem>>, %arg4: memref<1x2x128xf32, #tpu.memory_space<vmem>>, %arg5: memref<1x1x128xf32, #tpu.memory_space<vmem>>, %arg6: memref<1x8x128xf32, #tpu.memory_space<vmem>>) attributes {dimension_semantics = [#tpu.dimension_semantics<parallel>, #tpu.dimension_semantics<parallel>, #tpu.dimension_semantics<arbitrary>], iteration_bounds = array<i64: 3, 1, 1>, scalar_prefetch = 0 : i64, scratch_operands = 0 : i64, tpu.core_type = #tpu.core_type<tc>, window_params = [{transform_indices = @transform_0, window_bounds = array<i64: 1, 8, 16, 2>}, {transform_indices = @transform_1, window_bounds = array<i64: 1, 2, 128>}, {transform_indices = @transform_2, window_bounds = array<i64: 1, 1, 128>}, {transform_indices = @transform_3, window_bounds = array<i64: 1, 8, 128>}]} {
    %c0_i32 = arith.constant 0 : i32
    %0 = arith.cmpi eq, %arg2, %c0_i32 : i32
    %1 = arith.extui %0 : i1 to i32
    %c0_i32_0 = arith.constant 0 : i32
    %2 = arith.cmpi ne, %1, %c0_i32_0 : i32
    scf.if %2 {
      %cst_32 = arith.constant 0.000000e+00 : f32
      %95 = vector.broadcast %cst_32 : f32 to vector<8x128xf32>
      %c0_33 = arith.constant 0 : index
      %c0_34 = arith.constant 0 : index
      %c0_35 = arith.constant 0 : index
      %96 = vector.load %arg6[%c0_33, %c0_34, %c0_35] : memref<1x8x128xf32, #tpu.memory_space<vmem>>, vector<1x8x128xf32>
      %97 = vector.shape_cast %96 : vector<1x8x128xf32> to vector<8x128xf32>
      %98 = vector.shape_cast %95 : vector<8x128xf32> to vector<1x8x128xf32>
      tpu.vector_store %arg6[%c0_33, %c0_34, %c0_35], %98 {strides = array<i32>} : memref<1x8x128xf32, #tpu.memory_space<vmem>>, vector<1x8x128xf32>,
    } else {
    }
    %c0 = arith.constant 0 : index
    %c0_1 = arith.constant 0 : index
    %c0_2 = arith.constant 0 : index
    %3 = vector.load %arg4[%c0, %c0_1, %c0_2] : memref<1x2x128xf32, #tpu.memory_space<vmem>>, vector<1x1x128xf32>
    %4 = vector.shape_cast %3 : vector<1x1x128xf32> to vector<1x128xf32>
    %c0_3 = arith.constant 0 : index
    %c1 = arith.constant 1 : index
    %c0_4 = arith.constant 0 : index
    %5 = vector.load %arg4[%c0_3, %c1, %c0_4] : memref<1x2x128xf32, #tpu.memory_space<vmem>>, vector<1x1x128xf32>
    %6 = vector.shape_cast %5 : vector<1x1x128xf32> to vector<1x128xf32>
    %c0_5 = arith.constant 0 : index
    %c0_6 = arith.constant 0 : index
    %c0_7 = arith.constant 0 : index
    %7 = vector.load %arg5[%c0_5, %c0_6, %c0_7] : memref<1x1x128xf32, #tpu.memory_space<vmem>>, vector<1x1x128xf32>
    %8 = vector.shape_cast %7 : vector<1x1x128xf32> to vector<1x128xf32>
    %9 = math.absf %8 : vector<1x128xf32>
    %cst = arith.constant 0.000000e+00 : f32
    %10 = vector.broadcast %cst : f32 to vector<8x128xf32>
    %c0_i32_8 = arith.constant 0 : i32
    %c8_i32 = arith.constant 8 : i32
    %11 = arith.muli %c0_i32_8, %c8_i32 : i32
    %12 = tpu.assume_multiple %11, 8 : i32
    %c0_9 = arith.constant 0 : index
    %c0_10 = arith.constant 0 : index
    %13 = arith.index_cast %12 : i32 to index
    %c0_11 = arith.constant 0 : index
    %14 = vector.load %arg3[%c0_9, %c0_10, %13, %c0_11] : memref<1x8x16x2xf32, #tpu.memory_space<vmem>>, vector<1x8x8x2xf32>
    %15 = vector.shape_cast %14 : vector<1x8x8x2xf32> to vector<8x8x2xf32>
    %16 = vector.extract_strided_slice %15 {offsets = [0, 0, 0], sizes = [8, 8, 1], strides = [1, 1, 1]} : vector<8x8x2xf32> to vector<8x8x1xf32>
    %17 = vector.shape_cast %4 : vector<1x128xf32> to vector<1x1x128xf32>
    %18 = vector.broadcast %16 : vector<8x8x1xf32> to vector<8x8x128xf32>
    %19 = vector.broadcast %17 : vector<1x1x128xf32> to vector<8x8x128xf32>
    %20 = arith.subf %18, %19 : vector<8x8x128xf32>
    %21 = math.absf %20 : vector<8x8x128xf32>
    %22 = vector.extract_strided_slice %15 {offsets = [0, 0, 1], sizes = [8, 8, 1], strides = [1, 1, 1]} : vector<8x8x2xf32> to vector<8x8x1xf32>
    %23 = vector.shape_cast %6 : vector<1x128xf32> to vector<1x1x128xf32>
    %24 = vector.broadcast %22 : vector<8x8x1xf32> to vector<8x8x128xf32>
    %25 = vector.broadcast %23 : vector<1x1x128xf32> to vector<8x8x128xf32>
    %26 = arith.subf %24, %25 : vector<8x8x128xf32>
    %27 = math.absf %26 : vector<8x8x128xf32>
    %28 = arith.addf %21, %27 : vector<8x8x128xf32>
    %cst_12 = arith.constant 1.000000e+00 : f32
    %29 = vector.broadcast %cst_12 : f32 to vector<8x8x128xf32>
    %30 = arith.addf %29, %28 : vector<8x8x128xf32>
    %31 = tpu.reciprocal %30 {approx = true} : vector<8x8x128xf32> -> vector<8x8x128xf32>
    %32 = arith.mulf %30, %31 : vector<8x8x128xf32>
    %cst_13 = arith.constant 2.000000e+00 : f32
    %33 = vector.broadcast %cst_13 : f32 to vector<8x8x128xf32>
    %34 = arith.subf %33, %32 : vector<8x8x128xf32>
    %35 = arith.mulf %31, %34 : vector<8x8x128xf32>
    %36 = vector.shape_cast %9 : vector<1x128xf32> to vector<1x1x128xf32>
    %37 = vector.broadcast %36 : vector<1x1x128xf32> to vector<8x8x128xf32>
    %38 = arith.subf %37, %28 : vector<8x8x128xf32>
    %39 = math.absf %38 : vector<8x8x128xf32>
    %cst_14 = arith.constant 1.000000e+00 : f32
    %40 = vector.broadcast %cst_14 : f32 to vector<8x8x128xf32>
    %41 = arith.addf %40, %39 : vector<8x8x128xf32>
    %42 = tpu.reciprocal %41 {approx = true} : vector<8x8x128xf32> -> vector<8x8x128xf32>
    %43 = arith.mulf %41, %42 : vector<8x8x128xf32>
    %cst_15 = arith.constant 2.000000e+00 : f32
    %44 = vector.broadcast %cst_15 : f32 to vector<8x8x128xf32>
    %45 = arith.subf %44, %43 : vector<8x8x128xf32>
    %46 = arith.mulf %42, %45 : vector<8x8x128xf32>
    %47 = arith.subf %35, %46 : vector<8x8x128xf32>
    %cst_16 = arith.constant dense<0.000000e+00> : vector<8x128xf32>
    %48 = vector.multi_reduction <add>, %47, %cst_16 [1] : vector<8x8x128xf32> to vector<8x128xf32>
    %49 = arith.addf %10, %48 : vector<8x128xf32>
    %c1_i32 = arith.constant 1 : i32
    %c8_i32_17 = arith.constant 8 : i32
    %50 = arith.muli %c1_i32, %c8_i32_17 : i32
    %51 = tpu.assume_multiple %50, 8 : i32
    %c0_18 = arith.constant 0 : index
    %c0_19 = arith.constant 0 : index
    %52 = arith.index_cast %51 : i32 to index
    %c0_20 = arith.constant 0 : index
    %53 = vector.load %arg3[%c0_18, %c0_19, %52, %c0_20] : memref<1x8x16x2xf32, #tpu.memory_space<vmem>>, vector<1x8x8x2xf32>
    %54 = vector.shape_cast %53 : vector<1x8x8x2xf32> to vector<8x8x2xf32>
    %55 = vector.extract_strided_slice %54 {offsets = [0, 0, 0], sizes = [8, 8, 1], strides = [1, 1, 1]} : vector<8x8x2xf32> to vector<8x8x1xf32>
    %56 = vector.shape_cast %4 : vector<1x128xf32> to vector<1x1x128xf32>
    %57 = vector.broadcast %55 : vector<8x8x1xf32> to vector<8x8x128xf32>
    %58 = vector.broadcast %56 : vector<1x1x128xf32> to vector<8x8x128xf32>
    %59 = arith.subf %57, %58 : vector<8x8x128xf32>
    %60 = math.absf %59 : vector<8x8x128xf32>
    %61 = vector.extract_strided_slice %54 {offsets = [0, 0, 1], sizes = [8, 8, 1], strides = [1, 1, 1]} : vector<8x8x2xf32> to vector<8x8x1xf32>
    %62 = vector.shape_cast %6 : vector<1x128xf32> to vector<1x1x128xf32>
    %63 = vector.broadcast %61 : vector<8x8x1xf32> to vector<8x8x128xf32>
    %64 = vector.broadcast %62 : vector<1x1x128xf32> to vector<8x8x128xf32>
    %65 = arith.subf %63, %64 : vector<8x8x128xf32>
    %66 = math.absf %65 : vector<8x8x128xf32>
    %67 = arith.addf %60, %66 : vector<8x8x128xf32>
    %cst_21 = arith.constant 1.000000e+00 : f32
    %68 = vector.broadcast %cst_21 : f32 to vector<8x8x128xf32>
    %69 = arith.addf %68, %67 : vector<8x8x128xf32>
    %70 = tpu.reciprocal %69 {approx = true} : vector<8x8x128xf32> -> vector<8x8x128xf32>
    %71 = arith.mulf %69, %70 : vector<8x8x128xf32>
    %cst_22 = arith.constant 2.000000e+00 : f32
    %72 = vector.broadcast %cst_22 : f32 to vector<8x8x128xf32>
    %73 = arith.subf %72, %71 : vector<8x8x128xf32>
    %74 = arith.mulf %70, %73 : vector<8x8x128xf32>
    %75 = vector.shape_cast %9 : vector<1x128xf32> to vector<1x1x128xf32>
    %76 = vector.broadcast %75 : vector<1x1x128xf32> to vector<8x8x128xf32>
    %77 = arith.subf %76, %67 : vector<8x8x128xf32>
    %78 = math.absf %77 : vector<8x8x128xf32>
    %cst_23 = arith.constant 1.000000e+00 : f32
    %79 = vector.broadcast %cst_23 : f32 to vector<8x8x128xf32>
    %80 = arith.addf %79, %78 : vector<8x8x128xf32>
    %81 = tpu.reciprocal %80 {approx = true} : vector<8x8x128xf32> -> vector<8x8x128xf32>
    %82 = arith.mulf %80, %81 : vector<8x8x128xf32>
    %cst_24 = arith.constant 2.000000e+00 : f32
    %83 = vector.broadcast %cst_24 : f32 to vector<8x8x128xf32>
    %84 = arith.subf %83, %82 : vector<8x8x128xf32>
    %85 = arith.mulf %81, %84 : vector<8x8x128xf32>
    %86 = arith.subf %74, %85 : vector<8x8x128xf32>
    %cst_25 = arith.constant dense<0.000000e+00> : vector<8x128xf32>
    %87 = vector.multi_reduction <add>, %86, %cst_25 [1] : vector<8x8x128xf32> to vector<8x128xf32>
    %88 = arith.addf %49, %87 : vector<8x128xf32>
    %c2_i32 = arith.constant 2 : i32
    %c0_26 = arith.constant 0 : index
    %c0_27 = arith.constant 0 : index
    %c0_28 = arith.constant 0 : index
    %89 = vector.load %arg6[%c0_26, %c0_27, %c0_28] : memref<1x8x128xf32, #tpu.memory_space<vmem>>, vector<1x8x128xf32>
    %90 = vector.shape_cast %89 : vector<1x8x128xf32> to vector<8x128xf32>
    %91 = arith.addf %90, %88 : vector<8x128xf32>
    %c0_29 = arith.constant 0 : index
    %c0_30 = arith.constant 0 : index
    %c0_31 = arith.constant 0 : index
    %92 = vector.load %arg6[%c0_29, %c0_30, %c0_31] : memref<1x8x128xf32, #tpu.memory_space<vmem>>, vector<1x8x128xf32>
    %93 = vector.shape_cast %92 : vector<1x8x128xf32> to vector<8x128xf32>
    %94 = vector.shape_cast %91 : vector<8x128xf32> to vector<1x8x128xf32>
    tpu.vector_store %arg6[%c0_29, %c0_30, %c0_31], %94 {strides = array<i32>} : memref<1x8x128xf32, #tpu.memory_space<vmem>>, vector<1x8x128xf32>,
    return
  }
  func.func @transform_0(%arg0: i32, %arg1: i32, %arg2: i32) -> (i32, i32, i32, i32) {
    %c0_i32 = arith.constant 0 : i32
    %c0_i32_0 = arith.constant 0 : i32
    return %arg0, %arg1, %arg2, %c0_i32 : i32, i32, i32, i32
  }
  func.func @transform_1(%arg0: i32, %arg1: i32, %arg2: i32) -> (i32, i32, i32) {
    %c0_i32 = arith.constant 0 : i32
    %c0_i32_0 = arith.constant 0 : i32
    %c0_i32_1 = arith.constant 0 : i32
    return %arg0, %c0_i32, %c0_i32_0 : i32, i32, i32
  }
  func.func @transform_2(%arg0: i32, %arg1: i32, %arg2: i32) -> (i32, i32, i32) {
    %c0_i32 = arith.constant 0 : i32
    %c0_i32_0 = arith.constant 0 : i32
    %c0_i32_1 = arith.constant 0 : i32
    return %arg0, %c0_i32, %c0_i32_0 : i32, i32, i32
  }
  func.func @transform_3(%arg0: i32, %arg1: i32, %arg2: i32) -> (i32, i32, i32) {
    %c0_i32 = arith.constant 0 : i32
    %c0_i32_0 = arith.constant 0 : i32
    return %arg0, %arg1, %c0_i32 : i32, i32, i32
  }
}

</mosaic_0001>

<llo_original>
// kernel: tpu_custom_call.1
$region0: #{tpu_custom_call.1}
  #allocation0 [shape = 'u32[]', space=smem, size = 0x4, offset = 0x4, fixed_abs, tag = 'smem constant byte address 0x4 - core index']
  #allocation1 [shape = 'u32[72,128]{1,0:T(1,128)}', space=vmem, size = 0x9000, scoped, tag = 'internal scratch']
  %s0 = inlined_call_operand.vmem [shape: f32[3,8,16,2], index: 0, kind: input, shape index: {}]
  %s1 = inlined_call_operand.vmem [shape: f32[3,2,128], index: 1, kind: input, shape index: {}]
  %s2 = inlined_call_operand.vmem [shape: f32[3,1,128], index: 2, kind: input, shape index: {}]
  %s3 = inlined_call_operand.hbm [shape: f32[3,8,128], index: 3, kind: output, shape index: {}]
  %s4 = sld [smem:[#allocation0]]
  $region49: #{tpu_custom_call.1} parent=0
    _
  %s6 = ssub.s32 1, %s4
  %s7 = scalar_select 0, %s6, %s4
  $region1: #{tpu_custom_call.1} parent=0
    #allocation2 [shape = 'u8[8192]{0}', space=vmem, size = 0x2000, scoped, tag = 'output window, operand 0']
    #allocation3 [shape = 's32[2]{0}', space=sflag, size = 0x8, scoped, tag = 'scoped memory for tpu_custom_call.1']
    %8 = vsyncpa [#allocation3], 0
    %s9 = scalar_lea.sflag [#allocation3], 1
    %10 = vsyncpa %s9, 0
    loop: start=0, step=1, limit=5
    $region2: #{tpu_custom_call.1} parent=1 // loop_pre_header
      _
    $region3: #{tpu_custom_call.1} parent=1 // loop_header
      %s12 = sphi 0, %s16
      %p13 = scmp.ge.s32.totalorder %s12, 5
      %s19 = sphi 0, %s38
      %s20 = sphi 0, %s34
      %s21 = sphi 0, %s30
      %s22 = sphi 0, %s19
      %s23 = sphi 0, %s20
      %s24 = sphi 0, %s21
      %s25 = sphi 0, %s22
      %s26 = sphi 0, %s23
      %s27 = sphi 0, %s24
      %s45 = sphi 0, %s47
      %s48 = sphi 0, %s45
      %s49 = sphi 0, %s48
      %s65 = sphi 0, %s49
      %s71 = sphi 0, %s73
      %s74 = sphi 0, %s71
      %s75 = sphi 0, %s74
      %s91 = sphi 0, %s75
      %s97 = sphi 0, %s99
      %s100 = sphi 0, %s97
      %s101 = sphi 0, %s100
      %s117 = sphi 0, %s101
      %s125 = sphi 0, %s127
      %s128 = sphi 0, %s125
      %s129 = sphi 0, %s128
      %s145 = sphi 0, %s129
    $region4: #{tpu_custom_call.1} parent=1 // loop_header_branch
      %15 = sbr.rel (%p13) target = $region8
    $region5: #{tpu_custom_call.1} parent=1 // loop_body
      %s17 = ssub.s32 %s12, 1
      %s18 = ssub.s32 %s12, 2
      %s28 = sadd.s32 1, %s21
      %p29 = scmp.ge.s32.totalorder %s28, 1
      %s30 = scalar_select %p29, 0, %s28
      %s31 = sadd.s32 1, %s20
      %s32 = scalar_select %p29, %s31, %s20
      %p33 = scmp.ge.s32.totalorder %s32, 1
      %s34 = scalar_select %p33, 0, %s32
      %s35 = sadd.s32 1, %s19
      %s36 = scalar_select %p33, %s35, %s19
      %p37 = scmp.ge.s32.totalorder %s36, 3
      %s38 = scalar_select %p37, 0, %s36
      %s39 = ssub.s32 %s19, %s38
      %s40 = ssub.s32 %s20, %s34
      %s41 = sor.u32 %s39, %s40
      %s42 = ssub.s32 %s21, %s30
      %s43 = sor.u32 %s41, %s42
      %p44 = scmp.eq.s32.totalorder %s43, 0
      %s46 = sadd.s32 %s45, 1
      %s47 = scalar_select %p44, %s45, %s46
      %p50 = pneg %p44
      %p51 = scmp.eq.s32.totalorder %s12, 2
      %p52 = por %p50, %p51
      %p53 = scmp.ne.s32.totalorder %s45, %s48
      %p54 = scmp.eq.s32.totalorder %s12, 0
      %p55 = por %p53, %p54
      %p56 = scmp.ne.s32.totalorder %s45, %s48
      %p57 = scmp.eq.s32.totalorder %s17, 2
      %p58 = por %p56, %p57
      %p59 = scmp.ne.s32.totalorder %s48, %s49
      %p60 = scmp.eq.s32.totalorder %s17, 0
      %p61 = por %p59, %p60
      %p62 = scmp.ne.s32.totalorder %s48, %s49
      %p63 = scmp.eq.s32.totalorder %s18, 2
      %p64 = por %p62, %p63
      %p66 = scmp.ne.s32.totalorder %s49, %s65
      %p67 = scmp.eq.s32.totalorder %s18, 0
      %p68 = por %p66, %p67
      %s69 = ssub.s32 %s19, %s38
      %p70 = scmp.eq.s32.totalorder %s69, 0
      %s72 = sadd.s32 %s71, 1
      %s73 = scalar_select %p70, %s71, %s72
      %p76 = pneg %p70
      %p77 = scmp.eq.s32.totalorder %s12, 2
      %p78 = por %p76, %p77
      %p79 = scmp.ne.s32.totalorder %s71, %s74
      %p80 = scmp.eq.s32.totalorder %s12, 0
      %p81 = por %p79, %p80
      %p82 = scmp.ne.s32.totalorder %s71, %s74
      %p83 = scmp.eq.s32.totalorder %s17, 2
      %p84 = por %p82, %p83
      %p85 = scmp.ne.s32.totalorder %s74, %s75
      %p86 = scmp.eq.s32.totalorder %s17, 0
      %p87 = por %p85, %p86
      %p88 = scmp.ne.s32.totalorder %s74, %s75
      %p89 = scmp.eq.s32.totalorder %s18, 2
      %p90 = por %p88, %p89
      %p92 = scmp.ne.s32.totalorder %s75, %s91
      %p93 = scmp.eq.s32.totalorder %s18, 0
      %p94 = por %p92, %p93
      %s95 = ssub.s32 %s19, %s38
      %p96 = scmp.eq.s32.totalorder %s95, 0
      %s98 = sadd.s32 %s97, 1
      %s99 = scalar_select %p96, %s97, %s98
      %p102 = pneg %p96
      %p103 = scmp.eq.s32.totalorder %s12, 2
      %p104 = por %p102, %p103
      %p105 = scmp.ne.s32.totalorder %s97, %s100
      %p106 = scmp.eq.s32.totalorder %s12, 0
      %p107 = por %p105, %p106
      %p108 = scmp.ne.s32.totalorder %s97, %s100
      %p109 = scmp.eq.s32.totalorder %s17, 2
      %p110 = por %p108, %p109
      %p111 = scmp.ne.s32.totalorder %s100, %s101
      %p112 = scmp.eq.s32.totalorder %s17, 0
      %p113 = por %p111, %p112
      %p114 = scmp.ne.s32.totalorder %s100, %s101
      %p115 = scmp.eq.s32.totalorder %s18, 2
      %p116 = por %p114, %p115
      %p118 = scmp.ne.s32.totalorder %s101, %s117
      %p119 = scmp.eq.s32.totalorder %s18, 0
      %p120 = por %p118, %p119
      %s121 = ssub.s32 %s19, %s38
      %s122 = ssub.s32 %s20, %s34
      %s123 = sor.u32 %s121, %s122
      %p124 = scmp.eq.s32.totalorder %s123, 0
      %s126 = sadd.s32 %s125, 1
      %s127 = scalar_select %p124, %s125, %s126
      %p130 = pneg %p124
      %p131 = scmp.eq.s32.totalorder %s12, 2
      %p132 = por %p130, %p131
      %p133 = scmp.ne.s32.totalorder %s125, %s128
      %p134 = scmp.eq.s32.totalorder %s12, 0
      %p135 = por %p133, %p134
      %p136 = scmp.ne.s32.totalorder %s125, %s128
      %p137 = scmp.eq.s32.totalorder %s17, 2
      %p138 = por %p136, %p137
      %p139 = scmp.ne.s32.totalorder %s128, %s129
      %p140 = scmp.eq.s32.totalorder %s17, 0
      %p141 = por %p139, %p140
      %p142 = scmp.ne.s32.totalorder %s128, %s129
      %p143 = scmp.eq.s32.totalorder %s18, 2
      %p144 = por %p142, %p143
      %p146 = scmp.ne.s32.totalorder %s129, %s145
      %p147 = scmp.eq.s32.totalorder %s18, 0
      %p148 = por %p146, %p147
      %p149 = scmp.le.s32.totalorder 1, %s12
      %p150 = scmp.lt.s32.totalorder %s12, 4
      %p151 = pnand %p149, %p150
      %p152 = pneg %p151
      // Predicated region
      $region9: #{tpu_custom_call.1} parent=5 // pred_check
        _
      $region10: #{tpu_custom_call.1} parent=5 // pred_check_branch
        %154 = sbr.rel (%p151) target = $region12
      $region11: #{tpu_custom_call.1} parent=5 // pred_region
        %s155 = ssub.s32 %s12, 1
      $region12: #{tpu_custom_call.1} parent=5 // pred_fallthru
        _
      %p156 = scmp.lt.s32.totalorder %s12, 3
      // Predicated region
      $region13: #{tpu_custom_call.1} parent=5 // pred_check
        %p157 = pneg %p156
      $region14: #{tpu_custom_call.1} parent=5 // pred_check_branch
        %159 = sbr.rel (%p157) target = $region16
      $region15: #{tpu_custom_call.1} parent=5 // pred_region
        // Predicated region
        $region17: #{tpu_custom_call.1} parent=15 // pred_check
          %p160 = pneg %p55
        $region18: #{tpu_custom_call.1} parent=15 // pred_check_branch
          %162 = sbr.rel (%p160) target = $region20
        $region19: #{tpu_custom_call.1} parent=15 // pred_region
          %s163 = smul.u32 8, %s20
          %s164 = smul.u32 2, %s21
          %p165 = scmp.lt.s32.totalorder %s19, 2
          %s166 = scalar_select %p165, %s19, 2
          %p167 = scmp.lt.s32.totalorder %s163, 7
          %s168 = scalar_select %p167, %s163, 7
          %p169 = scmp.lt.s32.totalorder %s164, 1
          %s170 = scalar_select %p169, %s164, 1
          %s171 = smul.addr %s168, 2
          %s172 = sadd.s32 %s170, %s171
          %s173 = smul.addr %s166, 16
          %s174 = sadd.s32 %s172, %s173
          %s175 = smul.addr %s174, 8
          %s176 = scalar_lea.vmem %s0, %s175
          %s177 = smul.u32 8, %s20
          %s178 = smul.u32 2, %s21
        $region20: #{tpu_custom_call.1} parent=15 // pred_fallthru
          _
        // Predicated region
        $region21: #{tpu_custom_call.1} parent=15 // pred_check
          %p179 = pneg %p81
        $region22: #{tpu_custom_call.1} parent=15 // pred_check_branch
          %181 = sbr.rel (%p179) target = $region24
        $region23: #{tpu_custom_call.1} parent=15 // pred_region
          %p182 = scmp.lt.s32.totalorder %s19, 2
          %s183 = scalar_select %p182, %s19, 2
          %s184 = smul.addr %s183, 2
          %s185 = scalar_lea.vmem %s1, %s184
        $region24: #{tpu_custom_call.1} parent=15 // pred_fallthru
          _
        // Predicated region
        $region25: #{tpu_custom_call.1} parent=15 // pred_check
          %p186 = pneg %p107
        $region26: #{tpu_custom_call.1} parent=15 // pred_check_branch
          %188 = sbr.rel (%p186) target = $region28
        $region27: #{tpu_custom_call.1} parent=15 // pred_region
          %p189 = scmp.lt.s32.totalorder %s19, 2
          %s190 = scalar_select %p189, %s19, 2
          %s191 = scalar_lea.vmem %s2, %s190
        $region28: #{tpu_custom_call.1} parent=15 // pred_fallthru
          _
      $region16: #{tpu_custom_call.1} parent=5 // pred_fallthru
        _
      %p192 = scmp.le.s32.totalorder 1, %s12
      %p193 = scmp.lt.s32.totalorder %s12, 4
      %p194 = pnand %p192, %p193
      %p195 = pneg %p194
      // Predicated region
      $region29: #{tpu_custom_call.1} parent=5 // pred_check
        _
      $region30: #{tpu_custom_call.1} parent=5 // pred_check_branch
        %197 = sbr.rel (%p194) target = $region32
      $region31: #{tpu_custom_call.1} parent=5 // pred_region
        %s198 = ssub.s32 %s12, 1
        %s199 = smul.u32 8, %s23
        %s200 = smul.u32 2, %s24
        %p201 = scmp.lt.s32.totalorder %s22, 2
        %s202 = scalar_select %p201, %s22, 2
        %p203 = scmp.lt.s32.totalorder %s199, 7
        %s204 = scalar_select %p203, %s199, 7
        %p205 = scmp.lt.s32.totalorder %s200, 1
        %s206 = scalar_select %p205, %s200, 1
        %s207 = smul.addr %s204, 2
        %s208 = sadd.s32 %s206, %s207
        %s209 = smul.addr %s202, 16
        %s210 = sadd.s32 %s208, %s209
        %s211 = smul.addr %s210, 8
        %s212 = scalar_lea.vmem %s0, %s211
        %p213 = pneg %p61
        %p214 = pneg %p58
        %p215 = scmp.lt.s32.totalorder %s22, 2
        %s216 = scalar_select %p215, %s22, 2
        %s217 = smul.addr %s216, 2
        %s218 = scalar_lea.vmem %s1, %s217
        %p219 = pneg %p87
        %p220 = pneg %p84
        %p221 = scmp.lt.s32.totalorder %s22, 2
        %s222 = scalar_select %p221, %s22, 2
        %s223 = scalar_lea.vmem %s2, %s222
        %p224 = pneg %p113
        %p225 = pneg %p110
        %p226 = pneg %p141
        %p227 = pneg %p138
        %s228 = sand.u32 %s128, 1
        %s229 = scalar_lea.sflag [#allocation3], %s228
        %s230 = sand.u32 %s128, 1
        %s231 = smul.addr %s230, 8
        %s232 = scalar_lea.vmem [#allocation2], %s231
        %s233 = smul.u32 8, %s23
        %s234 = smul.u32 2, %s24
        %p235 = scmp.lt.s32.totalorder %s22, 2
        %s236 = scalar_select %p235, %s22, 2
        %p237 = scmp.lt.s32.totalorder %s233, 7
        %s238 = scalar_select %p237, %s233, 7
        %p239 = scmp.lt.s32.totalorder %s234, 1
        %s240 = scalar_select %p239, %s234, 1
        %s241 = smul.addr %s238, 2
        %s242 = sadd.s32 %s240, %s241
        %s243 = smul.addr %s236, 16
        %s244 = sadd.s32 %s242, %s243
        %s245 = smul.addr %s244, 8
        %s246 = scalar_lea.vmem %s0, %s245
        %s247 = smul.u32 8, %s23
        %s248 = smul.u32 2, %s24
        %p249 = scmp.lt.s32.totalorder %s22, 2
        %s250 = scalar_select %p249, %s22, 2
        %s251 = smul.addr %s250, 2
        %s252 = scalar_lea.vmem %s1, %s251
        %p253 = scmp.lt.s32.totalorder %s22, 2
        %s254 = scalar_select %p253, %s22, 2
        %s255 = scalar_lea.vmem %s2, %s254
        %p256 = scmp.eq.s32.totalorder %s24, 0
        // Predicated region
        $region33: #{tpu_custom_call.1} parent=31 // pred_check
          %p257 = pneg %p256
        $region34: #{tpu_custom_call.1} parent=31 // pred_check_branch
          %259 = sbr.rel (%p257) target = $region36
        $region35: #{tpu_custom_call.1} parent=31 // pred_region
          %260 = vst [vmem:[%s232] sm:$0xff] 0.0
        $region36: #{tpu_custom_call.1} parent=31 // pred_fallthru
          _
        %v261 = vld [vmem:[%s252] sm:$0x1]
        %v262 = vld [vmem:[%s252 + $0x1] sm:$0x1]
        %v263 = vld [vmem:[%s255] sm:$0x1]
        %v264 = vand.u32 2147483647, %v263
        %v265 = vld [vmem:[%s246] sm:$0xff]
        %v266 = vld [vmem:[%s246 + $0x10] sm:$0xff]
        %v267 = vld [vmem:[%s246 + $0x20] sm:$0xff]
        %v268 = vld [vmem:[%s246 + $0x30] sm:$0xff]
        %v269 = vld [vmem:[%s246 + $0x40] sm:$0xff]
        %v270 = vld [vmem:[%s246 + $0x50] sm:$0xff]
        %v271 = vld [vmem:[%s246 + $0x60] sm:$0xff]
        %v272 = vld [vmem:[%s246 + $0x70] sm:$0xff]
        %274 = vset.pattern.permute.xlu0 0
        %275 = vperm.xlu0 %274, %v265
        %v276 = vpop.permute.xlu0 %275
        %279 = vset.pattern.permute.xlu0 0
        %280 = vperm.xlu0 %279, %v266
        %v281 = vpop.permute.xlu0 %280
        %284 = vset.pattern.permute.xlu0 0
        %285 = vperm.xlu0 %284, %v267
        %v286 = vpop.permute.xlu0 %285
        %289 = vset.pattern.permute.xlu0 0
        %290 = vperm.xlu0 %289, %v268
        %v291 = vpop.permute.xlu0 %290
        %294 = vset.pattern.permute.xlu0 0
        %295 = vperm.xlu0 %294, %v269
        %v296 = vpop.permute.xlu0 %295
        %299 = vset.pattern.permute.xlu0 0
        %300 = vperm.xlu0 %299, %v270
        %v301 = vpop.permute.xlu0 %300
        %304 = vset.pattern.permute.xlu0 0
        %305 = vperm.xlu0 %304, %v271
        %v306 = vpop.permute.xlu0 %305
        %309 = vset.pattern.permute.xlu0 0
        %310 = vperm.xlu0 %309, %v272
        %v311 = vpop.permute.xlu0 %310
        %v313 = vperm.slane %v261, 0
        %v314 = vsub.f32 %v276, %v313
        %v315 = vsub.f32 %v281, %v313
        %v316 = vsub.f32 %v286, %v313
        %v317 = vsub.f32 %v291, %v313
        %v318 = vsub.f32 %v296, %v313
        %v319 = vsub.f32 %v301, %v313
        %v320 = vsub.f32 %v306, %v313
        %v321 = vsub.f32 %v311, %v313
        %v322 = vand.u32 2147483647, %v314
        %v323 = vand.u32 2147483647, %v315
        %v324 = vand.u32 2147483647, %v316
        %v325 = vand.u32 2147483647, %v317
        %v326 = vand.u32 2147483647, %v318
        %v327 = vand.u32 2147483647, %v319
        %v328 = vand.u32 2147483647, %v320
        %v329 = vand.u32 2147483647, %v321
        %330 = vset.pattern.permute.xlu0 1
        %331 = vperm.xlu0 %330, %v265
        %v332 = vpop.permute.xlu0 %331
        %334 = vset.pattern.permute.xlu0 1
        %335 = vperm.xlu0 %334, %v266
        %v336 = vpop.permute.xlu0 %335
        %338 = vset.pattern.permute.xlu0 1
        %339 = vperm.xlu0 %338, %v267
        %v340 = vpop.permute.xlu0 %339
        %342 = vset.pattern.permute.xlu0 1
        %343 = vperm.xlu0 %342, %v268
        %v344 = vpop.permute.xlu0 %343
        %346 = vset.pattern.permute.xlu0 1
        %347 = vperm.xlu0 %346, %v269
        %v348 = vpop.permute.xlu0 %347
        %350 = vset.pattern.permute.xlu0 1
        %351 = vperm.xlu0 %350, %v270
        %v352 = vpop.permute.xlu0 %351
        %354 = vset.pattern.permute.xlu0 1
        %355 = vperm.xlu0 %354, %v271
        %v356 = vpop.permute.xlu0 %355
        %358 = vset.pattern.permute.xlu0 1
        %359 = vperm.xlu0 %358, %v272
        %v360 = vpop.permute.xlu0 %359
        %v362 = vperm.slane %v262, 0
        %v363 = vsub.f32 %v332, %v362
        %v364 = vsub.f32 %v336, %v362
        %v365 = vsub.f32 %v340, %v362
        %v366 = vsub.f32 %v344, %v362
        %v367 = vsub.f32 %v348, %v362
        %v368 = vsub.f32 %v352, %v362
        %v369 = vsub.f32 %v356, %v362
        %v370 = vsub.f32 %v360, %v362
        %v371 = vand.u32 2147483647, %v363
        %v372 = vand.u32 2147483647, %v364
        %v373 = vand.u32 2147483647, %v365
        %v374 = vand.u32 2147483647, %v366
        %v375 = vand.u32 2147483647, %v367
        %v376 = vand.u32 2147483647, %v368
        %v377 = vand.u32 2147483647, %v369
        %v378 = vand.u32 2147483647, %v370
        %v379 = vadd.f32 %v322, %v371
        %v380 = vadd.f32 %v323, %v372
        %v381 = vadd.f32 %v324, %v373
        %v382 = vadd.f32 %v325, %v374
        %v383 = vadd.f32 %v326, %v375
        %v384 = vadd.f32 %v327, %v376
        %v385 = vadd.f32 %v328, %v377
        %v386 = vadd.f32 %v329, %v378
        %v387 = vadd.f32 %v379, 1.0
        %v388 = vadd.f32 %v380, 1.0
        %v389 = vadd.f32 %v381, 1.0
        %v390 = vadd.f32 %v382, 1.0
        %v391 = vadd.f32 %v383, 1.0
        %v392 = vadd.f32 %v384, 1.0
        %v393 = vadd.f32 %v385, 1.0
        %v394 = vadd.f32 %v386, 1.0
        %v395 = vrcp.pop %v387
        %v396 = vrcp.pop %v388
        %v397 = vrcp.pop %v389
        %v398 = vrcp.pop %v390
        %v399 = vrcp.pop %v391
        %v400 = vrcp.pop %v392
        %v401 = vrcp.pop %v393
        %v402 = vrcp.pop %v394
        %v403 = vmul.f32 %v387, %v395
        %v404 = vmul.f32 %v388, %v396
        %v405 = vmul.f32 %v389, %v397
        %v406 = vmul.f32 %v390, %v398
        %v407 = vmul.f32 %v391, %v399
        %v408 = vmul.f32 %v392, %v400
        %v409 = vmul.f32 %v393, %v401
        %v410 = vmul.f32 %v394, %v402
        %v411 = vsub.f32 2.0, %v403
        %v412 = vsub.f32 2.0, %v404
        %v413 = vsub.f32 2.0, %v405
        %v414 = vsub.f32 2.0, %v406
        %v415 = vsub.f32 2.0, %v407
        %v416 = vsub.f32 2.0, %v408
        %v417 = vsub.f32 2.0, %v409
        %v418 = vsub.f32 2.0, %v410
        %v419 = vmul.f32 %v395, %v411
        %v420 = vmul.f32 %v396, %v412
        %v421 = vmul.f32 %v397, %v413
        %v422 = vmul.f32 %v398, %v414
        %v423 = vmul.f32 %v399, %v415
        %v424 = vmul.f32 %v400, %v416
        %v425 = vmul.f32 %v401, %v417
        %v426 = vmul.f32 %v402, %v418
        %v428 = vperm.slane %v264, 0
        %v430 = vsub.f32 %v428, %v379
        %v431 = vsub.f32 %v428, %v380
        %v432 = vsub.f32 %v428, %v381
        %v433 = vsub.f32 %v428, %v382
        %v434 = vsub.f32 %v428, %v383
        %v435 = vsub.f32 %v428, %v384
        %v436 = vsub.f32 %v428, %v385
        %v437 = vsub.f32 %v428, %v386
        %v438 = vand.u32 2147483647, %v430
        %v439 = vand.u32 2147483647, %v431
        %v440 = vand.u32 2147483647, %v432
        %v441 = vand.u32 2147483647, %v433
        %v442 = vand.u32 2147483647, %v434
        %v443 = vand.u32 2147483647, %v435
        %v444 = vand.u32 2147483647, %v436
        %v445 = vand.u32 2147483647, %v437
        %v446 = vadd.f32 %v438, 1.0
        %v447 = vadd.f32 %v439, 1.0
        %v448 = vadd.f32 %v440, 1.0
        %v449 = vadd.f32 %v441, 1.0
        %v450 = vadd.f32 %v442, 1.0
        %v451 = vadd.f32 %v443, 1.0
        %v452 = vadd.f32 %v444, 1.0
        %v453 = vadd.f32 %v445, 1.0
        %v454 = vrcp.pop %v446
        %v455 = vrcp.pop %v447
        %v456 = vrcp.pop %v448
        %v457 = vrcp.pop %v449
        %v458 = vrcp.pop %v450
        %v459 = vrcp.pop %v451
        %v460 = vrcp.pop %v452
        %v461 = vrcp.pop %v453
        %v462 = vmul.f32 %v446, %v454
        %v463 = vmul.f32 %v447, %v455
        %v464 = vmul.f32 %v448, %v456
        %v465 = vmul.f32 %v449, %v457
        %v466 = vmul.f32 %v450, %v458
        %v467 = vmul.f32 %v451, %v459
        %v468 = vmul.f32 %v452, %v460
        %v469 = vmul.f32 %v453, %v461
        %v470 = vsub.f32 2.0, %v462
        %v471 = vsub.f32 2.0, %v463
        %v472 = vsub.f32 2.0, %v464
        %v473 = vsub.f32 2.0, %v465
        %v474 = vsub.f32 2.0, %v466
        %v475 = vsub.f32 2.0, %v467
        %v476 = vsub.f32 2.0, %v468
        %v477 = vsub.f32 2.0, %v469
        %v478 = vmul.f32 %v454, %v470
        %v479 = vmul.f32 %v455, %v471
        %v480 = vmul.f32 %v456, %v472
        %v481 = vmul.f32 %v457, %v473
        %v482 = vmul.f32 %v458, %v474
        %v483 = vmul.f32 %v459, %v475
        %v484 = vmul.f32 %v460, %v476
        %v485 = vmul.f32 %v461, %v477
        %v486 = vsub.f32 %v419, %v478
        %v487 = vsub.f32 %v420, %v479
        %v488 = vsub.f32 %v421, %v480
        %v489 = vsub.f32 %v422, %v481
        %v490 = vsub.f32 %v423, %v482
        %v491 = vsub.f32 %v424, %v483
        %v492 = vsub.f32 %v425, %v484
        %v493 = vsub.f32 %v426, %v485
        %v494 = vrot.slane %v486, 4
        %v495 = vadd.f32 %v486, %v494
        %v496 = vrot.slane %v495, 2
        %v497 = vadd.f32 %v495, %v496
        %v498 = vrot.slane %v497, 1
        %v499 = vadd.f32 %v497, %v498
        %v500 = vrot.slane %v487, 4
        %v501 = vadd.f32 %v487, %v500
        %v502 = vrot.slane %v501, 2
        %v503 = vadd.f32 %v501, %v502
        %v504 = vrot.slane %v503, 1
        %v505 = vadd.f32 %v503, %v504
        %v506 = vrot.slane %v488, 4
        %v507 = vadd.f32 %v488, %v506
        %v508 = vrot.slane %v507, 2
        %v509 = vadd.f32 %v507, %v508
        %v510 = vrot.slane %v509, 1
        %v511 = vadd.f32 %v509, %v510
        %v512 = vrot.slane %v489, 4
        %v513 = vadd.f32 %v489, %v512
        %v514 = vrot.slane %v513, 2
        %v515 = vadd.f32 %v513, %v514
        %v516 = vrot.slane %v515, 1
        %v517 = vadd.f32 %v515, %v516
        %v518 = vrot.slane %v490, 4
        %v519 = vadd.f32 %v490, %v518
        %v520 = vrot.slane %v519, 2
        %v521 = vadd.f32 %v519, %v520
        %v522 = vrot.slane %v521, 1
        %v523 = vadd.f32 %v521, %v522
        %v524 = vrot.slane %v491, 4
        %v525 = vadd.f32 %v491, %v524
        %v526 = vrot.slane %v525, 2
        %v527 = vadd.f32 %v525, %v526
        %v528 = vrot.slane %v527, 1
        %v529 = vadd.f32 %v527, %v528
        %v530 = vrot.slane %v492, 4
        %v531 = vadd.f32 %v492, %v530
        %v532 = vrot.slane %v531, 2
        %v533 = vadd.f32 %v531, %v532
        %v534 = vrot.slane %v533, 1
        %v535 = vadd.f32 %v533, %v534
        %v536 = vrot.slane %v493, 4
        %v537 = vadd.f32 %v493, %v536
        %v538 = vrot.slane %v537, 2
        %v539 = vadd.f32 %v537, %v538
        %v540 = vrot.slane %v539, 1
        %v541 = vadd.f32 %v539, %v540
        %v542 = vadd.f32 %v499, 0.0
        %v543 = vadd.f32 %v505, 0.0
        %v544 = vadd.f32 %v511, 0.0
        %v545 = vadd.f32 %v517, 0.0
        %v546 = vadd.f32 %v523, 0.0
        %v547 = vadd.f32 %v529, 0.0
        %v548 = vadd.f32 %v535, 0.0
        %v549 = vadd.f32 %v541, 0.0
        %s550 = scalar_lea.vmem %s246, 8
        %v551 = vld [vmem:[%s550] sm:$0xff]
        %v552 = vld [vmem:[%s550 + $0x10] sm:$0xff]
        %v553 = vld [vmem:[%s550 + $0x20] sm:$0xff]
        %v554 = vld [vmem:[%s550 + $0x30] sm:$0xff]
        %v555 = vld [vmem:[%s550 + $0x40] sm:$0xff]
        %v556 = vld [vmem:[%s550 + $0x50] sm:$0xff]
        %v557 = vld [vmem:[%s550 + $0x60] sm:$0xff]
        %v558 = vld [vmem:[%s550 + $0x70] sm:$0xff]
        %560 = vset.pattern.permute.xlu0 0
        %561 = vperm.xlu0 %560, %v551
        %v562 = vpop.permute.xlu0 %561
        %565 = vset.pattern.permute.xlu0 0
        %566 = vperm.xlu0 %565, %v552
        %v567 = vpop.permute.xlu0 %566
        %570 = vset.pattern.permute.xlu0 0
        %571 = vperm.xlu0 %570, %v553
        %v572 = vpop.permute.xlu0 %571
        %575 = vset.pattern.permute.xlu0 0
        %576 = vperm.xlu0 %575, %v554
        %v577 = vpop.permute.xlu0 %576
        %580 = vset.pattern.permute.xlu0 0
        %581 = vperm.xlu0 %580, %v555
        %v582 = vpop.permute.xlu0 %581
        %585 = vset.pattern.permute.xlu0 0
        %586 = vperm.xlu0 %585, %v556
        %v587 = vpop.permute.xlu0 %586
        %590 = vset.pattern.permute.xlu0 0
        %591 = vperm.xlu0 %590, %v557
        %v592 = vpop.permute.xlu0 %591
        %595 = vset.pattern.permute.xlu0 0
        %596 = vperm.xlu0 %595, %v558
        %v597 = vpop.permute.xlu0 %596
        %v599 = vsub.f32 %v562, %v313
        %v600 = vsub.f32 %v567, %v313
        %v601 = vsub.f32 %v572, %v313
        %v602 = vsub.f32 %v577, %v313
        %v603 = vsub.f32 %v582, %v313
        %v604 = vsub.f32 %v587, %v313
        %v605 = vsub.f32 %v592, %v313
        %v606 = vsub.f32 %v597, %v313
        %v607 = vand.u32 2147483647, %v599
        %v608 = vand.u32 2147483647, %v600
        %v609 = vand.u32 2147483647, %v601
        %v610 = vand.u32 2147483647, %v602
        %v611 = vand.u32 2147483647, %v603
        %v612 = vand.u32 2147483647, %v604
        %v613 = vand.u32 2147483647, %v605
        %v614 = vand.u32 2147483647, %v606
        %615 = vset.pattern.permute.xlu0 1
        %616 = vperm.xlu0 %615, %v551
        %v617 = vpop.permute.xlu0 %616
        %619 = vset.pattern.permute.xlu0 1
        %620 = vperm.xlu0 %619, %v552
        %v621 = vpop.permute.xlu0 %620
        %623 = vset.pattern.permute.xlu0 1
        %624 = vperm.xlu0 %623, %v553
        %v625 = vpop.permute.xlu0 %624
        %627 = vset.pattern.permute.xlu0 1
        %628 = vperm.xlu0 %627, %v554
        %v629 = vpop.permute.xlu0 %628
        %631 = vset.pattern.permute.xlu0 1
        %632 = vperm.xlu0 %631, %v555
        %v633 = vpop.permute.xlu0 %632
        %635 = vset.pattern.permute.xlu0 1
        %636 = vperm.xlu0 %635, %v556
        %v637 = vpop.permute.xlu0 %636
        %639 = vset.pattern.permute.xlu0 1
        %640 = vperm.xlu0 %639, %v557
        %v641 = vpop.permute.xlu0 %640
        %643 = vset.pattern.permute.xlu0 1
        %644 = vperm.xlu0 %643, %v558
        %v645 = vpop.permute.xlu0 %644
        %v647 = vsub.f32 %v617, %v362
        %v648 = vsub.f32 %v621, %v362
        %v649 = vsub.f32 %v625, %v362
        %v650 = vsub.f32 %v629, %v362
        %v651 = vsub.f32 %v633, %v362
        %v652 = vsub.f32 %v637, %v362
        %v653 = vsub.f32 %v641, %v362
        %v654 = vsub.f32 %v645, %v362
        %v655 = vand.u32 2147483647, %v647
        %v656 = vand.u32 2147483647, %v648
        %v657 = vand.u32 2147483647, %v649
        %v658 = vand.u32 2147483647, %v650
        %v659 = vand.u32 2147483647, %v651
        %v660 = vand.u32 2147483647, %v652
        %v661 = vand.u32 2147483647, %v653
        %v662 = vand.u32 2147483647, %v654
        %v663 = vadd.f32 %v607, %v655
        %v664 = vadd.f32 %v608, %v656
        %v665 = vadd.f32 %v609, %v657
        %v666 = vadd.f32 %v610, %v658
        %v667 = vadd.f32 %v611, %v659
        %v668 = vadd.f32 %v612, %v660
        %v669 = vadd.f32 %v613, %v661
        %v670 = vadd.f32 %v614, %v662
        %v671 = vadd.f32 %v663, 1.0
        %v672 = vadd.f32 %v664, 1.0
        %v673 = vadd.f32 %v665, 1.0
        %v674 = vadd.f32 %v666, 1.0
        %v675 = vadd.f32 %v667, 1.0
        %v676 = vadd.f32 %v668, 1.0
        %v677 = vadd.f32 %v669, 1.0
        %v678 = vadd.f32 %v670, 1.0
        %v679 = vrcp.pop %v671
        %v680 = vrcp.pop %v672
        %v681 = vrcp.pop %v673
        %v682 = vrcp.pop %v674
        %v683 = vrcp.pop %v675
        %v684 = vrcp.pop %v676
        %v685 = vrcp.pop %v677
        %v686 = vrcp.pop %v678
        %v687 = vmul.f32 %v671, %v679
        %v688 = vmul.f32 %v672, %v680
        %v689 = vmul.f32 %v673, %v681
        %v690 = vmul.f32 %v674, %v682
        %v691 = vmul.f32 %v675, %v683
        %v692 = vmul.f32 %v676, %v684
        %v693 = vmul.f32 %v677, %v685
        %v694 = vmul.f32 %v678, %v686
        %v695 = vsub.f32 2.0, %v687
        %v696 = vsub.f32 2.0, %v688
        %v697 = vsub.f32 2.0, %v689
        %v698 = vsub.f32 2.0, %v690
        %v699 = vsub.f32 2.0, %v691
        %v700 = vsub.f32 2.0, %v692
        %v701 = vsub.f32 2.0, %v693
        %v702 = vsub.f32 2.0, %v694
        %v703 = vmul.f32 %v679, %v695
        %v704 = vmul.f32 %v680, %v696
        %v705 = vmul.f32 %v681, %v697
        %v706 = vmul.f32 %v682, %v698
        %v707 = vmul.f32 %v683, %v699
        %v708 = vmul.f32 %v684, %v700
        %v709 = vmul.f32 %v685, %v701
        %v710 = vmul.f32 %v686, %v702
        %v711 = vsub.f32 %v428, %v663
        %v712 = vsub.f32 %v428, %v664
        %v713 = vsub.f32 %v428, %v665
        %v714 = vsub.f32 %v428, %v666
        %v715 = vsub.f32 %v428, %v667
        %v716 = vsub.f32 %v428, %v668
        %v717 = vsub.f32 %v428, %v669
        %v718 = vsub.f32 %v428, %v670
        %v719 = vand.u32 2147483647, %v711
        %v720 = vand.u32 2147483647, %v712
        %v721 = vand.u32 2147483647, %v713
        %v722 = vand.u32 2147483647, %v714
        %v723 = vand.u32 2147483647, %v715
        %v724 = vand.u32 2147483647, %v716
        %v725 = vand.u32 2147483647, %v717
        %v726 = vand.u32 2147483647, %v718
        %v727 = vadd.f32 %v719, 1.0
        %v728 = vadd.f32 %v720, 1.0
        %v729 = vadd.f32 %v721, 1.0
        %v730 = vadd.f32 %v722, 1.0
        %v731 = vadd.f32 %v723, 1.0
        %v732 = vadd.f32 %v724, 1.0
        %v733 = vadd.f32 %v725, 1.0
        %v734 = vadd.f32 %v726, 1.0
        %v735 = vrcp.pop %v727
        %v736 = vrcp.pop %v728
        %v737 = vrcp.pop %v729
        %v738 = vrcp.pop %v730
        %v739 = vrcp.pop %v731
        %v740 = vrcp.pop %v732
        %v741 = vrcp.pop %v733
        %v742 = vrcp.pop %v734
        %v743 = vmul.f32 %v727, %v735
        %v744 = vmul.f32 %v728, %v736
        %v745 = vmul.f32 %v729, %v737
        %v746 = vmul.f32 %v730, %v738
        %v747 = vmul.f32 %v731, %v739
        %v748 = vmul.f32 %v732, %v740
        %v749 = vmul.f32 %v733, %v741
        %v750 = vmul.f32 %v734, %v742
        %v751 = vsub.f32 2.0, %v743
        %v752 = vsub.f32 2.0, %v744
        %v753 = vsub.f32 2.0, %v745
        %v754 = vsub.f32 2.0, %v746
        %v755 = vsub.f32 2.0, %v747
        %v756 = vsub.f32 2.0, %v748
        %v757 = vsub.f32 2.0, %v749
        %v758 = vsub.f32 2.0, %v750
        %v759 = vmul.f32 %v735, %v751
        %v760 = vmul.f32 %v736, %v752
        %v761 = vmul.f32 %v737, %v753
        %v762 = vmul.f32 %v738, %v754
        %v763 = vmul.f32 %v739, %v755
        %v764 = vmul.f32 %v740, %v756
        %v765 = vmul.f32 %v741, %v757
        %v766 = vmul.f32 %v742, %v758
        %v767 = vsub.f32 %v703, %v759
        %v768 = vsub.f32 %v704, %v760
        %v769 = vsub.f32 %v705, %v761
        %v770 = vsub.f32 %v706, %v762
        %v771 = vsub.f32 %v707, %v763
        %v772 = vsub.f32 %v708, %v764
        %v773 = vsub.f32 %v709, %v765
        %v774 = vsub.f32 %v710, %v766
        %v775 = vrot.slane %v767, 4
        %v776 = vadd.f32 %v767, %v775
        %v777 = vrot.slane %v776, 2
        %v778 = vadd.f32 %v776, %v777
        %v779 = vrot.slane %v778, 1
        %v780 = vadd.f32 %v778, %v779
        %v781 = vrot.slane %v768, 4
        %v782 = vadd.f32 %v768, %v781
        %v783 = vrot.slane %v782, 2
        %v784 = vadd.f32 %v782, %v783
        %v785 = vrot.slane %v784, 1
        %v786 = vadd.f32 %v784, %v785
        %v787 = vrot.slane %v769, 4
        %v788 = vadd.f32 %v769, %v787
        %v789 = vrot.slane %v788, 2
        %v790 = vadd.f32 %v788, %v789
        %v791 = vrot.slane %v790, 1
        %v792 = vadd.f32 %v790, %v791
        %v793 = vrot.slane %v770, 4
        %v794 = vadd.f32 %v770, %v793
        %v795 = vrot.slane %v794, 2
        %v796 = vadd.f32 %v794, %v795
        %v797 = vrot.slane %v796, 1
        %v798 = vadd.f32 %v796, %v797
        %v799 = vrot.slane %v771, 4
        %v800 = vadd.f32 %v771, %v799
        %v801 = vrot.slane %v800, 2
        %v802 = vadd.f32 %v800, %v801
        %v803 = vrot.slane %v802, 1
        %v804 = vadd.f32 %v802, %v803
        %v805 = vrot.slane %v772, 4
        %v806 = vadd.f32 %v772, %v805
        %v807 = vrot.slane %v806, 2
        %v808 = vadd.f32 %v806, %v807
        %v809 = vrot.slane %v808, 1
        %v810 = vadd.f32 %v808, %v809
        %v811 = vrot.slane %v773, 4
        %v812 = vadd.f32 %v773, %v811
        %v813 = vrot.slane %v812, 2
        %v814 = vadd.f32 %v812, %v813
        %v815 = vrot.slane %v814, 1
        %v816 = vadd.f32 %v814, %v815
        %v817 = vrot.slane %v774, 4
        %v818 = vadd.f32 %v774, %v817
        %v819 = vrot.slane %v818, 2
        %v820 = vadd.f32 %v818, %v819
        %v821 = vrot.slane %v820, 1
        %v822 = vadd.f32 %v820, %v821
        %v823 = vadd.f32 %v542, %v780
        %v824 = vadd.f32 %v543, %v786
        %v825 = vadd.f32 %v544, %v792
        %v826 = vadd.f32 %v545, %v798
        %v827 = vadd.f32 %v546, %v804
        %v828 = vadd.f32 %v547, %v810
        %v829 = vadd.f32 %v548, %v816
        %v830 = vadd.f32 %v549, %v822
        %v831 = vld [vmem:[%s232] sm:$0xff]
        %vm840 = vcmask 1041409
        %v841 = vsel %vm840, %v824, %v823
        %vm842 = vcmask 1042434
        %v843 = vsel %vm842, %v825, %v841
        %vm844 = vcmask 1043459
        %v845 = vsel %vm844, %v826, %v843
        %vm846 = vcmask 1044484
        %v847 = vsel %vm846, %v827, %v845
        %vm848 = vcmask 1045509
        %v849 = vsel %vm848, %v828, %v847
        %vm850 = vcmask 1046534
        %v851 = vsel %vm850, %v829, %v849
        %vm852 = vcmask 1047559
        %v853 = vsel %vm852, %v830, %v851
        %v855 = vadd.f32 %v831, %v853
        %856 = vst [vmem:[%s232] sm:$0xff] %v855
        %s857 = sand.u32 %s128, 1
        %s858 = scalar_lea.sflag [#allocation3], %s857
        %s859 = sand.u32 %s128, 1
        %s860 = smul.addr %s859, 8
        %s861 = scalar_lea.vmem [#allocation2], %s860
        // Predicated region
        $region37: #{tpu_custom_call.1} parent=31 // pred_check
          %p862 = pneg %p138
        $region38: #{tpu_custom_call.1} parent=31 // pred_check_branch
          %864 = sbr.rel (%p862) target = $region40
        $region39: #{tpu_custom_call.1} parent=31 // pred_region
          %866 = vsyncadd %s858, 0
          %s867 = sadd.s32 %s23, %s22
          %s868 = smul.addr %s867, 8
          %s869 = scalar_lea.hbm %s3, %s868
          %s871 = sshll.u32 %s861, 4
          %s872 = int_to_ptr.vmem [resolvable:$true] %s871
          %s873 = sshll.u32 %s869, 4
          %s874 = int_to_ptr.hbm [resolvable:$true] %s873
          %876 = dma.vmem_to_hbm [thread:$0]  %s872, 128, %s874, %s858
        $region40: #{tpu_custom_call.1} parent=31 // pred_fallthru
          _
      $region32: #{tpu_custom_call.1} parent=5 // pred_fallthru
        _
      %p877 = scmp.le.s32.totalorder 2, %s12
      // Predicated region
      $region41: #{tpu_custom_call.1} parent=5 // pred_check
        %p878 = pneg %p877
      $region42: #{tpu_custom_call.1} parent=5 // pred_check_branch
        %880 = sbr.rel (%p878) target = $region44
      $region43: #{tpu_custom_call.1} parent=5 // pred_region
        %s881 = ssub.s32 %s12, 2
        // Predicated region
        $region45: #{tpu_custom_call.1} parent=43 // pred_check
          %p882 = pneg %p144
        $region46: #{tpu_custom_call.1} parent=43 // pred_check_branch
          %884 = sbr.rel (%p882) target = $region48
        $region47: #{tpu_custom_call.1} parent=43 // pred_region
          %s885 = sand.u32 %s129, 1
          %s886 = scalar_lea.sflag [#allocation3], %s885
          %s887 = sand.u32 %s129, 1
          %s888 = smul.addr %s887, 8
          %s889 = scalar_lea.vmem [#allocation2], %s888
          %891 = dma.done %s886, 128
        $region48: #{tpu_custom_call.1} parent=43 // pred_fallthru
          _
      $region44: #{tpu_custom_call.1} parent=5 // pred_fallthru
        _
    $region6: #{tpu_custom_call.1} parent=1 // loop_footer
      %s16 = sadd.s32 1, %s12
    $region7: #{tpu_custom_call.1} parent=1 // loop_footer_branch
      %11 = sbr.rel target = $region3
    $region8: #{tpu_custom_call.1} parent=1 // loop_exit
      _
    %892 = vsyncpa [#allocation3], 1
    %s893 = scalar_lea.sflag [#allocation3], 1
    %894 = vsyncpa %s893, 1

</llo_original>
